<compile_context>
chip_gen: v6e
topology: v6e:2x2x1
jax: 0.10.0
libtpu: 0.0.40
codegen_flags: <defaults>
</compile_context>

<pallas_src>
import functools

import jax
import jax.numpy as jnp
from jax import lax
from jax.experimental import pallas as pl
from jax.experimental.pallas import tpu as pltpu


def _round_up(n: int, m: int) -> int:
    return ((n + m - 1) // m) * m


# ----------------------------------------------------------------------------
# Parameter initialization (mirrors nn.init.orthogonal_ gain=sqrt(2), zero bias).
# Weights are stored in kernel layout [in, out] (transposed from torch's [out, in]).
# ----------------------------------------------------------------------------
def _orthogonal(key, out_dim, in_dim, gain):
    rows, cols = out_dim, in_dim
    a = jax.random.normal(key, (rows, cols), dtype=jnp.float32)
    transposed = rows < cols
    if transposed:
        a = a.T
    q, r = jnp.linalg.qr(a)
    d = jnp.sign(jnp.diagonal(r))
    q = q * d[None, :]
    if transposed:
        q = q.T
    return (gain * q).astype(jnp.float32)


def init_trading_network_params(key, input_dim, action_dim, hidden_dim=256):
    gain = jnp.sqrt(2.0)
    h, h2, h4 = hidden_dim, hidden_dim // 2, hidden_dim // 4
    shapes = [
        ("w1", h, input_dim), ("w2", h, h), ("w3", h2, h),
        ("wa1", h4, h2), ("wa2", action_dim, h4),
        ("wc1", h4, h2), ("wc2", 1, h4),
    ]
    keys = jax.random.split(key, len(shapes))
    params = {}
    for k, (name, o, i) in zip(keys, shapes):
        w = _orthogonal(k, o, i, gain)            # torch layout [out, in]
        params[name] = w.T                         # kernel layout [in, out]
        params["b" + name[1:]] = jnp.zeros((1, o), dtype=jnp.float32)
    return params


# ----------------------------------------------------------------------------
# Pack parameters: fuse heads, pad only the packed OUTPUT axis to lane width (128).
# Matmul-operand weights default to bf16 (f32 accumulation in-kernel). Biases stay f32.
# ----------------------------------------------------------------------------
def pack_params(params, weight_dtype=jnp.bfloat16):
    in_dim, h = params["w1"].shape
    h2 = params["w3"].shape[1]
    h4 = params["wa1"].shape[1]
    action_dim = params["wa2"].shape[1]
    out_pad = _round_up(action_dim + 1, 128)

    # Fused head layer 1: [h2, 2*h4] = actor | critic side by side.
    wh1 = jnp.concatenate([params["wa1"], params["wc1"]], axis=1)
    bh1 = jnp.concatenate([params["ba1"], params["bc1"]], axis=1)

    # Fused head layer 2: block-diagonal, padded to a lane-dense 128-wide output.
    wh2 = jnp.zeros((2 * h4, out_pad), jnp.float32)
    wh2 = wh2.at[:h4, :action_dim].set(params["wa2"])
    wh2 = wh2.at[h4:, action_dim:action_dim + 1].set(params["wc2"])
    bh2 = jnp.zeros((1, out_pad), jnp.float32)
    bh2 = bh2.at[:, :action_dim].set(params["ba2"])
    bh2 = bh2.at[:, action_dim:action_dim + 1].set(params["bc2"])

    packed = {
        "w1": params["w1"].astype(weight_dtype), "b1": params["b1"],
        "w2": params["w2"].astype(weight_dtype), "b2": params["b2"],
        "w3": params["w3"].astype(weight_dtype), "b3": params["b3"],
        "wh1": wh1.astype(weight_dtype), "bh1": bh1,
        "wh2": wh2.astype(weight_dtype), "bh2": bh2,
    }
    meta = {"input_dim": int(in_dim), "action_dim": int(action_dim)}
    return packed, meta


_WEIGHT_NAMES = ["w1", "b1", "w2", "b2", "w3", "b3", "wh1", "bh1", "wh2", "bh2"]


# ----------------------------------------------------------------------------
# Fused kernel: feature_net (3x Linear+ReLU) + fused actor/critic heads.
# Output is lane-dense (TB, OUT_PAD): tanh applied only to the action columns.
# ----------------------------------------------------------------------------
def trading_network_kernel(
    x_ref,
    w1_ref, b1_ref, w2_ref, b2_ref, w3_ref, b3_ref,
    wh1_ref, bh1_ref, wh2_ref, bh2_ref,
    out_ref,
    *, action_dim,
):
    wdt = w1_ref.dtype  # matmul operand dtype (bf16 default); accumulation is f32.
    x = x_ref[...]

    h = jnp.maximum(
        jnp.dot(x.astype(wdt), w1_ref[...], preferred_element_type=jnp.float32)
        + b1_ref[...], 0.0)
    # Dropout(0.1) -> identity in eval mode.
    h = jnp.maximum(
        jnp.dot(h.astype(wdt), w2_ref[...], preferred_element_type=jnp.float32)
        + b2_ref[...], 0.0)
    # Dropout(0.1) -> identity in eval mode.
    feats = jnp.maximum(
        jnp.dot(h.astype(wdt), w3_ref[...], preferred_element_type=jnp.float32)
        + b3_ref[...], 0.0)

    # Fused actor+critic hidden layer (one full-width matmul instead of two half ones).
    hh = jnp.maximum(
        jnp.dot(feats.astype(wdt), wh1_ref[...], preferred_element_type=jnp.float32)
        + bh1_ref[...], 0.0)

    # Fused output layer: block-diagonal weight; lane-dense store.
    z = (jnp.dot(hh.astype(wdt), wh2_ref[...], preferred_element_type=jnp.float32)
         + bh2_ref[...])
    col = lax.broadcasted_iota(jnp.int32, z.shape, 1)
    out_ref[...] = jnp.where(col < action_dim, jnp.tanh(z), z).astype(out_ref.dtype)


# ----------------------------------------------------------------------------
# Wrapper: batch-tiled pallas_call; slices the packed output back into (action, value).
# ----------------------------------------------------------------------------
def trading_network_forward(packed, meta, x, *, block_batch=2048,
                            out_dtype=jnp.bfloat16):
    batch, in_dim = x.shape
    action_dim = meta["action_dim"]
    assert in_dim == packed["w1"].shape[0]

    h = packed["w1"].shape[1]
    h2 = packed["w3"].shape[1]
    hh = packed["wh1"].shape[1]
    out_pad = packed["wh2"].shape[1]

    # Batch tile: multiple of 16 (safe sublane tiling for f32 and bf16 outputs),
    # balanced across steps so large batches don't over-pad; force >=2 grid steps
    # when batch allows so the 'parallel' axis shards across v7x's two TensorCores.
    tb_cap = max(_round_up(block_batch, 16), 16)
    num_steps = pl.cdiv(batch, tb_cap)
    if batch > 16:
        num_steps = max(num_steps, 2)
    tb = _round_up(pl.cdiv(batch, num_steps), 16)
    pb = num_steps * tb

    # Pad only the batch axis (feature axis is passed unpadded).
    if pb != batch:
        xp = jnp.zeros((pb, in_dim), x.dtype).at[:batch, :].set(x)
    else:
        xp = x

    grid = (num_steps,)

    def const_spec(shape):
        nd = len(shape)
        return pl.BlockSpec(shape, lambda i, _nd=nd: (0,) * _nd)

    in_specs = [pl.BlockSpec((tb, in_dim), lambda i: (i, 0))]
    in_specs += [const_spec(tuple(packed[n].shape)) for n in _WEIGHT_NAMES]
    out_spec = pl.BlockSpec((tb, out_pad), lambda i: (i, 0))

    flops = 2 * pb * (in_dim * h + h * h + h * h2 + h2 * hh + hh * out_pad)
    transcendentals = pb * out_pad  # tanh evaluated across the packed output lanes
    bytes_accessed = int(
        xp.size * xp.dtype.itemsize
        + pb * out_pad * jnp.dtype(out_dtype).itemsize
        + sum(int(packed[n].size) * packed[n].dtype.itemsize for n in _WEIGHT_NAMES))

    out = pl.pallas_call(
        functools.partial(trading_network_kernel, action_dim=action_dim),
        grid=grid,
        in_specs=in_specs,
        out_specs=out_spec,
        out_shape=jax.ShapeDtypeStruct((pb, out_pad), out_dtype),
        compiler_params=pltpu.CompilerParams(
            dimension_semantics=("parallel",),
            vmem_limit_bytes=48 * 1024 * 1024),
        cost_estimate=pl.CostEstimate(
            flops=flops,
            transcendentals=transcendentals,
            bytes_accessed=bytes_accessed),
    )(xp, *[packed[n] for n in _WEIGHT_NAMES])

    action = out[:batch, :action_dim].astype(jnp.float32)
    value = out[:batch, action_dim:action_dim + 1].astype(jnp.float32)
    return action, value


# ----------------------------------------------------------------------------
# Pure-JAX f32 reference (on the raw/unpacked params), full-precision matmuls.
# ----------------------------------------------------------------------------
def reference_forward(params, x):
    hp = lax.Precision.HIGHEST
    h1 = jnp.maximum(jnp.dot(x, params["w1"], precision=hp) + params["b1"], 0.0)
    h2 = jnp.maximum(jnp.dot(h1, params["w2"], precision=hp) + params["b2"], 0.0)
    f = jnp.maximum(jnp.dot(h2, params["w3"], precision=hp) + params["b3"], 0.0)
    ah = jnp.maximum(jnp.dot(f, params["wa1"], precision=hp) + params["ba1"], 0.0)
    a = jnp.tanh(jnp.dot(ah, params["wa2"], precision=hp) + params["ba2"])
    ch = jnp.maximum(jnp.dot(f, params["wc1"], precision=hp) + params["bc1"], 0.0)
    v = jnp.dot(ch, params["wc2"], precision=hp) + params["bc2"]
    return a, v


if __name__ == "__main__":
    key = jax.random.PRNGKey(0)
    k_param, k_x = jax.random.split(key)

    # Small shapes; batch=40 with block_batch=32 exercises batch padding + a 2-step grid.
    batch, input_dim, action_dim, hidden_dim = 40, 16, 4, 32
    params = init_trading_network_params(k_param, input_dim, action_dim, hidden_dim)
    x = jax.random.normal(k_x, (batch, input_dim), dtype=jnp.float32)

    ref_action, ref_value = reference_forward(params, x)

    # f32-weight / f32-output path: packing-correctness check with tight-ish tolerance.
    packed_f32, meta = pack_params(params, weight_dtype=jnp.float32)
    a32, v32 = trading_network_forward(packed_f32, meta, x,
                                       block_batch=32, out_dtype=jnp.float32)
    jax.block_until_ready((a32, v32))
    assert a32.shape == (batch, action_dim)
    assert v32.shape == (batch, 1)
    assert jnp.allclose(a32, ref_action, atol=5e-3, rtol=5e-3)
    assert jnp.allclose(v32, ref_value, atol=5e-3, rtol=5e-3)

    # Default fast path: bf16 matmul operands + bf16 packed output, f32 accumulation.
    packed_bf16, meta_b = pack_params(params)  # weight_dtype defaults to bf16
    ab, vb = trading_network_forward(packed_bf16, meta_b, x, block_batch=32)
    jax.block_until_ready((ab, vb))
    assert ab.shape == (batch, action_dim)
    assert vb.shape == (batch, 1)
    assert jnp.allclose(ab, ref_action, atol=1e-1, rtol=1e-1)
    assert jnp.allclose(vb, ref_value, atol=1e-1, rtol=1e-1)

    print("KERNEL_OK")
</pallas_src>

<mosaic_0001>
module attributes {stable_mosaic.version = 11 : i64} {
  func.func @trading_network_kernel(%arg0: i32, %arg1: memref<32x16xf32, #tpu.memory_space<vmem>>, %arg2: memref<16x32xf32, #tpu.memory_space<vmem>>, %arg3: memref<1x32xf32, #tpu.memory_space<vmem>>, %arg4: memref<32x32xf32, #tpu.memory_space<vmem>>, %arg5: memref<1x32xf32, #tpu.memory_space<vmem>>, %arg6: memref<32x16xf32, #tpu.memory_space<vmem>>, %arg7: memref<1x16xf32, #tpu.memory_space<vmem>>, %arg8: memref<16x16xf32, #tpu.memory_space<vmem>>, %arg9: memref<1x16xf32, #tpu.memory_space<vmem>>, %arg10: memref<16x128xf32, #tpu.memory_space<vmem>>, %arg11: memref<1x128xf32, #tpu.memory_space<vmem>>, %arg12: memref<32x128xf32, #tpu.memory_space<vmem>>) attributes {dimension_semantics = [#tpu.dimension_semantics<parallel>], iteration_bounds = array<i64: 2>, scalar_prefetch = 0 : i64, scratch_operands = 0 : i64, tpu.core_type = #tpu.core_type<tc>, window_params = [{transform_indices = @transform_0, window_bounds = array<i64: 32, 16>}, {pipeline_mode = #tpu.pipeline_mode<synchronous>, transform_indices = @transform_1, window_bounds = array<i64: 16, 32>}, {pipeline_mode = #tpu.pipeline_mode<synchronous>, transform_indices = @transform_2, window_bounds = array<i64: 1, 32>}, {pipeline_mode = #tpu.pipeline_mode<synchronous>, transform_indices = @transform_3, window_bounds = array<i64: 32, 32>}, {pipeline_mode = #tpu.pipeline_mode<synchronous>, transform_indices = @transform_4, window_bounds = array<i64: 1, 32>}, {pipeline_mode = #tpu.pipeline_mode<synchronous>, transform_indices = @transform_5, window_bounds = array<i64: 32, 16>}, {pipeline_mode = #tpu.pipeline_mode<synchronous>, transform_indices = @transform_6, window_bounds = array<i64: 1, 16>}, {pipeline_mode = #tpu.pipeline_mode<synchronous>, transform_indices = @transform_7, window_bounds = array<i64: 16, 16>}, {pipeline_mode = #tpu.pipeline_mode<synchronous>, transform_indices = @transform_8, window_bounds = array<i64: 1, 16>}, {pipeline_mode = #tpu.pipeline_mode<synchronous>, transform_indices = @transform_9, window_bounds = array<i64: 16, 128>}, {pipeline_mode = #tpu.pipeline_mode<synchronous>, transform_indices = @transform_10, window_bounds = array<i64: 1, 128>}, {transform_indices = @transform_11, window_bounds = array<i64: 32, 128>}]} {
    %c0 = arith.constant 0 : index
    %c0_0 = arith.constant 0 : index
    %0 = vector.load %arg1[%c0, %c0_0] : memref<32x16xf32, #tpu.memory_space<vmem>>, vector<32x16xf32>
    %c0_1 = arith.constant 0 : index
    %c0_2 = arith.constant 0 : index
    %1 = vector.load %arg2[%c0_1, %c0_2] : memref<16x32xf32, #tpu.memory_space<vmem>>, vector<16x32xf32>
    %cst = arith.constant dense<0.000000e+00> : vector<32x32xf32>
    %2 = tpu.matmul %0, %1, %cst {dimension_numbers = #tpu.dot_dimension_numbers<[1], [0], [0], [1], [0, 0, 1, 1], [], []>} : vector<32x16xf32>, vector<16x32xf32>, vector<32x32xf32> -> vector<32x32xf32>
    %c0_3 = arith.constant 0 : index
    %c0_4 = arith.constant 0 : index
    %3 = vector.load %arg3[%c0_3, %c0_4] : memref<1x32xf32, #tpu.memory_space<vmem>>, vector<1x32xf32>
    %4 = vector.broadcast %3 : vector<1x32xf32> to vector<32x32xf32>
    %5 = arith.addf %2, %4 : vector<32x32xf32>
    %cst_5 = arith.constant 0.000000e+00 : f32
    %6 = vector.broadcast %cst_5 : f32 to vector<32x32xf32>
    %7 = arith.maximumf %5, %6 : vector<32x32xf32>
    %c0_6 = arith.constant 0 : index
    %c0_7 = arith.constant 0 : index
    %8 = vector.load %arg4[%c0_6, %c0_7] : memref<32x32xf32, #tpu.memory_space<vmem>>, vector<32x32xf32>
    %cst_8 = arith.constant dense<0.000000e+00> : vector<32x32xf32>
    %9 = tpu.matmul %7, %8, %cst_8 {dimension_numbers = #tpu.dot_dimension_numbers<[1], [0], [0], [1], [0, 0, 1, 1], [], []>} : vector<32x32xf32>, vector<32x32xf32>, vector<32x32xf32> -> vector<32x32xf32>
    %c0_9 = arith.constant 0 : index
    %c0_10 = arith.constant 0 : index
    %10 = vector.load %arg5[%c0_9, %c0_10] : memref<1x32xf32, #tpu.memory_space<vmem>>, vector<1x32xf32>
    %11 = vector.broadcast %10 : vector<1x32xf32> to vector<32x32xf32>
    %12 = arith.addf %9, %11 : vector<32x32xf32>
    %cst_11 = arith.constant 0.000000e+00 : f32
    %13 = vector.broadcast %cst_11 : f32 to vector<32x32xf32>
    %14 = arith.maximumf %12, %13 : vector<32x32xf32>
    %c0_12 = arith.constant 0 : index
    %c0_13 = arith.constant 0 : index
    %15 = vector.load %arg6[%c0_12, %c0_13] : memref<32x16xf32, #tpu.memory_space<vmem>>, vector<32x16xf32>
    %cst_14 = arith.constant dense<0.000000e+00> : vector<32x16xf32>
    %16 = tpu.matmul %14, %15, %cst_14 {dimension_numbers = #tpu.dot_dimension_numbers<[1], [0], [0], [1], [0, 0, 1, 1], [], []>} : vector<32x32xf32>, vector<32x16xf32>, vector<32x16xf32> -> vector<32x16xf32>
    %c0_15 = arith.constant 0 : index
    %c0_16 = arith.constant 0 : index
    %17 = vector.load %arg7[%c0_15, %c0_16] : memref<1x16xf32, #tpu.memory_space<vmem>>, vector<1x16xf32>
    %18 = vector.broadcast %17 : vector<1x16xf32> to vector<32x16xf32>
    %19 = arith.addf %16, %18 : vector<32x16xf32>
    %cst_17 = arith.constant 0.000000e+00 : f32
    %20 = vector.broadcast %cst_17 : f32 to vector<32x16xf32>
    %21 = arith.maximumf %19, %20 : vector<32x16xf32>
    %c0_18 = arith.constant 0 : index
    %c0_19 = arith.constant 0 : index
    %22 = vector.load %arg8[%c0_18, %c0_19] : memref<16x16xf32, #tpu.memory_space<vmem>>, vector<16x16xf32>
    %cst_20 = arith.constant dense<0.000000e+00> : vector<32x16xf32>
    %23 = tpu.matmul %21, %22, %cst_20 {dimension_numbers = #tpu.dot_dimension_numbers<[1], [0], [0], [1], [0, 0, 1, 1], [], []>} : vector<32x16xf32>, vector<16x16xf32>, vector<32x16xf32> -> vector<32x16xf32>
    %c0_21 = arith.constant 0 : index
    %c0_22 = arith.constant 0 : index
    %24 = vector.load %arg9[%c0_21, %c0_22] : memref<1x16xf32, #tpu.memory_space<vmem>>, vector<1x16xf32>
    %25 = vector.broadcast %24 : vector<1x16xf32> to vector<32x16xf32>
    %26 = arith.addf %23, %25 : vector<32x16xf32>
    %cst_23 = arith.constant 0.000000e+00 : f32
    %27 = vector.broadcast %cst_23 : f32 to vector<32x16xf32>
    %28 = arith.maximumf %26, %27 : vector<32x16xf32>
    %c0_24 = arith.constant 0 : index
    %c0_25 = arith.constant 0 : index
    %29 = vector.load %arg10[%c0_24, %c0_25] : memref<16x128xf32, #tpu.memory_space<vmem>>, vector<16x128xf32>
    %cst_26 = arith.constant dense<0.000000e+00> : vector<32x128xf32>
    %30 = tpu.matmul %28, %29, %cst_26 {dimension_numbers = #tpu.dot_dimension_numbers<[1], [0], [0], [1], [0, 0, 1, 1], [], []>} : vector<32x16xf32>, vector<16x128xf32>, vector<32x128xf32> -> vector<32x128xf32>
    %c0_27 = arith.constant 0 : index
    %c0_28 = arith.constant 0 : index
    %31 = vector.load %arg11[%c0_27, %c0_28] : memref<1x128xf32, #tpu.memory_space<vmem>>, vector<1x128xf32>
    %32 = vector.broadcast %31 : vector<1x128xf32> to vector<32x128xf32>
    %33 = arith.addf %30, %32 : vector<32x128xf32>
    %34 = tpu.iota {dimensions = array<i32: 1>} : vector<32x128xi32>
    %c4_i32 = arith.constant 4 : i32
    %35 = vector.broadcast %c4_i32 : i32 to vector<32x128xi32>
    %36 = arith.cmpi slt, %34, %35 : vector<32x128xi32>
    %37 = math.tanh %33 : vector<32x128xf32>
    %38 = arith.select %36, %37, %33 : vector<32x128xi1>, vector<32x128xf32>
    %c0_29 = arith.constant 0 : index
    %c0_30 = arith.constant 0 : index
    %39 = vector.load %arg12[%c0_29, %c0_30] : memref<32x128xf32, #tpu.memory_space<vmem>>, vector<32x128xf32>
    tpu.vector_store %arg12[%c0_29, %c0_30], %38 {strides = array<i32>} : memref<32x128xf32, #tpu.memory_space<vmem>>, vector<32x128xf32>,
    return
  }
  func.func @transform_0(%arg0: i32) -> (i32, i32) {
    %c0_i32 = arith.constant 0 : i32
    %c0_i32_0 = arith.constant 0 : i32
    return %arg0, %c0_i32 : i32, i32
  }
  func.func @transform_1(%arg0: i32) -> (i32, i32) {
    %c0_i32 = arith.constant 0 : i32
    %c0_i32_0 = arith.constant 0 : i32
    %c0_i32_1 = arith.constant 0 : i32
    return %c0_i32, %c0_i32_0 : i32, i32
  }
  func.func @transform_2(%arg0: i32) -> (i32, i32) {
    %c0_i32 = arith.constant 0 : i32
    %c0_i32_0 = arith.constant 0 : i32
    %c0_i32_1 = arith.constant 0 : i32
    return %c0_i32, %c0_i32_0 : i32, i32
  }
  func.func @transform_3(%arg0: i32) -> (i32, i32) {
    %c0_i32 = arith.constant 0 : i32
    %c0_i32_0 = arith.constant 0 : i32
    %c0_i32_1 = arith.constant 0 : i32
    return %c0_i32, %c0_i32_0 : i32, i32
  }
  func.func @transform_4(%arg0: i32) -> (i32, i32) {
    %c0_i32 = arith.constant 0 : i32
    %c0_i32_0 = arith.constant 0 : i32
    %c0_i32_1 = arith.constant 0 : i32
    return %c0_i32, %c0_i32_0 : i32, i32
  }
  func.func @transform_5(%arg0: i32) -> (i32, i32) {
    %c0_i32 = arith.constant 0 : i32
    %c0_i32_0 = arith.constant 0 : i32
    %c0_i32_1 = arith.constant 0 : i32
    return %c0_i32, %c0_i32_0 : i32, i32
  }
  func.func @transform_6(%arg0: i32) -> (i32, i32) {
    %c0_i32 = arith.constant 0 : i32
    %c0_i32_0 = arith.constant 0 : i32
    %c0_i32_1 = arith.constant 0 : i32
    return %c0_i32, %c0_i32_0 : i32, i32
  }
  func.func @transform_7(%arg0: i32) -> (i32, i32) {
    %c0_i32 = arith.constant 0 : i32
    %c0_i32_0 = arith.constant 0 : i32
    %c0_i32_1 = arith.constant 0 : i32
    return %c0_i32, %c0_i32_0 : i32, i32
  }
  func.func @transform_8(%arg0: i32) -> (i32, i32) {
    %c0_i32 = arith.constant 0 : i32
    %c0_i32_0 = arith.constant 0 : i32
    %c0_i32_1 = arith.constant 0 : i32
    return %c0_i32, %c0_i32_0 : i32, i32
  }
  func.func @transform_9(%arg0: i32) -> (i32, i32) {
    %c0_i32 = arith.constant 0 : i32
    %c0_i32_0 = arith.constant 0 : i32
    %c0_i32_1 = arith.constant 0 : i32
    return %c0_i32, %c0_i32_0 : i32, i32
  }
  func.func @transform_10(%arg0: i32) -> (i32, i32) {
    %c0_i32 = arith.constant 0 : i32
    %c0_i32_0 = arith.constant 0 : i32
    %c0_i32_1 = arith.constant 0 : i32
    return %c0_i32, %c0_i32_0 : i32, i32
  }
  func.func @transform_11(%arg0: i32) -> (i32, i32) {
    %c0_i32 = arith.constant 0 : i32
    %c0_i32_0 = arith.constant 0 : i32
    return %arg0, %c0_i32 : i32, i32
  }
}

</mosaic_0001>

<llo_original>
// kernel: tpu_custom_call.1
$region0: #{tpu_custom_call.1}
  #allocation0 [shape = 'u32[]', space=smem, size = 0x4, offset = 0x4, fixed_abs, tag = 'smem constant byte address 0x4 - core index']
  #allocation1 [shape = 'u32[144,128]{1,0:T(1,128)}', space=vmem, size = 0x12000, scoped, tag = 'internal scratch']
  %s0 = inlined_call_operand.vmem [shape: f32[64,16], index: 0, kind: input, shape index: {}]
  %s1 = inlined_call_operand.vmem [shape: f32[16,32], index: 1, kind: input, shape index: {}]
  %s2 = inlined_call_operand.vmem [shape: f32[1,32], index: 2, kind: input, shape index: {}]
  %s3 = inlined_call_operand.vmem [shape: f32[32,32], index: 3, kind: input, shape index: {}]
  %s4 = inlined_call_operand.vmem [shape: f32[1,32], index: 4, kind: input, shape index: {}]
  %s5 = inlined_call_operand.vmem [shape: f32[32,16], index: 5, kind: input, shape index: {}]
  %s6 = inlined_call_operand.vmem [shape: f32[1,16], index: 6, kind: input, shape index: {}]
  %s7 = inlined_call_operand.vmem [shape: f32[16,16], index: 7, kind: input, shape index: {}]
  %s8 = inlined_call_operand.vmem [shape: f32[1,16], index: 8, kind: input, shape index: {}]
  %s9 = inlined_call_operand.vmem [shape: f32[16,128], index: 9, kind: input, shape index: {}]
  %s10 = inlined_call_operand.vmem [shape: f32[1,128], index: 10, kind: input, shape index: {}]
  %s11 = inlined_call_operand.hbm [shape: f32[64,128], index: 11, kind: output, shape index: {}]
  %s12 = sld [smem:[#allocation0]]
  $region77: #{tpu_custom_call.1} parent=0
    _
  %s14 = ssub.s32 1, %s12
  %s15 = scalar_select 0, %s14, %s12
  $region1: #{tpu_custom_call.1} parent=0
    #allocation2 [shape = 'u8[32768]{0}', space=vmem, size = 0x8000, scoped, tag = 'output window, operand 0']
    #allocation3 [shape = 's32[2]{0}', space=sflag, size = 0x8, scoped, tag = 'scoped memory for tpu_custom_call.1']
    %16 = vsyncpa [#allocation3], 0
    %s17 = scalar_lea.sflag [#allocation3], 1
    %18 = vsyncpa %s17, 0
    loop: start=0, step=1, limit=4
    $region2: #{tpu_custom_call.1} parent=1 // loop_pre_header
      _
    $region3: #{tpu_custom_call.1} parent=1 // loop_header
      %s20 = sphi 0, %s24
      %p21 = scmp.ge.s32.totalorder %s20, 4
      %s30 = sphi 0, %s32
      %s33 = sphi 0, %s30
      %s34 = sphi 0, %s33
      %s50 = sphi 0, %s34
      %s54 = sphi 0, %s54
      %s56 = sphi 0, %s54
      %s57 = sphi 0, %s56
      %s71 = sphi 0, %s57
      %s75 = sphi 0, %s75
      %s77 = sphi 0, %s75
      %s78 = sphi 0, %s77
      %s92 = sphi 0, %s78
      %s96 = sphi 0, %s96
      %s98 = sphi 0, %s96
      %s99 = sphi 0, %s98
      %s113 = sphi 0, %s99
      %s117 = sphi 0, %s117
      %s119 = sphi 0, %s117
      %s120 = sphi 0, %s119
      %s134 = sphi 0, %s120
      %s138 = sphi 0, %s138
      %s140 = sphi 0, %s138
      %s141 = sphi 0, %s140
      %s155 = sphi 0, %s141
      %s159 = sphi 0, %s159
      %s161 = sphi 0, %s159
      %s162 = sphi 0, %s161
      %s176 = sphi 0, %s162
      %s180 = sphi 0, %s180
      %s182 = sphi 0, %s180
      %s183 = sphi 0, %s182
      %s197 = sphi 0, %s183
      %s201 = sphi 0, %s201
      %s203 = sphi 0, %s201
      %s204 = sphi 0, %s203
      %s218 = sphi 0, %s204
      %s222 = sphi 0, %s222
      %s224 = sphi 0, %s222
      %s225 = sphi 0, %s224
      %s239 = sphi 0, %s225
      %s243 = sphi 0, %s243
      %s245 = sphi 0, %s243
      %s246 = sphi 0, %s245
      %s260 = sphi 0, %s246
      %s266 = sphi 0, %s268
      %s269 = sphi 0, %s266
      %s270 = sphi 0, %s269
      %s286 = sphi 0, %s270
    $region4: #{tpu_custom_call.1} parent=1 // loop_header_branch
      %23 = sbr.rel (%p21) target = $region8
    $region5: #{tpu_custom_call.1} parent=1 // loop_body
      %s25 = ssub.s32 %s20, 1
      %s26 = ssub.s32 %s20, 2
      %s27 = sadd.s32 %s20, 1
      %s28 = ssub.s32 %s20, %s27
      %p29 = scmp.eq.s32.totalorder %s28, 0
      %s31 = sadd.s32 %s30, 1
      %s32 = scalar_select %p29, %s30, %s31
      %p35 = pneg %p29
      %p36 = scmp.eq.s32.totalorder %s20, 1
      %p37 = por %p35, %p36
      %p38 = scmp.ne.s32.totalorder %s30, %s33
      %p39 = scmp.eq.s32.totalorder %s20, 0
      %p40 = por %p38, %p39
      %p41 = scmp.ne.s32.totalorder %s30, %s33
      %p42 = scmp.eq.s32.totalorder %s25, 1
      %p43 = por %p41, %p42
      %p44 = scmp.ne.s32.totalorder %s33, %s34
      %p45 = scmp.eq.s32.totalorder %s25, 0
      %p46 = por %p44, %p45
      %p47 = scmp.ne.s32.totalorder %s33, %s34
      %p48 = scmp.eq.s32.totalorder %s26, 1
      %p49 = por %p47, %p48
      %p51 = scmp.ne.s32.totalorder %s34, %s50
      %p52 = scmp.eq.s32.totalorder %s26, 0
      %p53 = por %p51, %p52
      %s55 = sadd.s32 %s54, 1
      %p58 = scmp.eq.s32.totalorder %s20, 1
      %p59 = scmp.ne.s32.totalorder %s54, %s56
      %p60 = scmp.eq.s32.totalorder %s20, 0
      %p61 = por %p59, %p60
      %p62 = scmp.ne.s32.totalorder %s54, %s56
      %p63 = scmp.eq.s32.totalorder %s25, 1
      %p64 = por %p62, %p63
      %p65 = scmp.ne.s32.totalorder %s56, %s57
      %p66 = scmp.eq.s32.totalorder %s25, 0
      %p67 = por %p65, %p66
      %p68 = scmp.ne.s32.totalorder %s56, %s57
      %p69 = scmp.eq.s32.totalorder %s26, 1
      %p70 = por %p68, %p69
      %p72 = scmp.ne.s32.totalorder %s57, %s71
      %p73 = scmp.eq.s32.totalorder %s26, 0
      %p74 = por %p72, %p73
      %s76 = sadd.s32 %s75, 1
      %p79 = scmp.eq.s32.totalorder %s20, 1
      %p80 = scmp.ne.s32.totalorder %s75, %s77
      %p81 = scmp.eq.s32.totalorder %s20, 0
      %p82 = por %p80, %p81
      %p83 = scmp.ne.s32.totalorder %s75, %s77
      %p84 = scmp.eq.s32.totalorder %s25, 1
      %p85 = por %p83, %p84
      %p86 = scmp.ne.s32.totalorder %s77, %s78
      %p87 = scmp.eq.s32.totalorder %s25, 0
      %p88 = por %p86, %p87
      %p89 = scmp.ne.s32.totalorder %s77, %s78
      %p90 = scmp.eq.s32.totalorder %s26, 1
      %p91 = por %p89, %p90
      %p93 = scmp.ne.s32.totalorder %s78, %s92
      %p94 = scmp.eq.s32.totalorder %s26, 0
      %p95 = por %p93, %p94
      %s97 = sadd.s32 %s96, 1
      %p100 = scmp.eq.s32.totalorder %s20, 1
      %p101 = scmp.ne.s32.totalorder %s96, %s98
      %p102 = scmp.eq.s32.totalorder %s20, 0
      %p103 = por %p101, %p102
      %p104 = scmp.ne.s32.totalorder %s96, %s98
      %p105 = scmp.eq.s32.totalorder %s25, 1
      %p106 = por %p104, %p105
      %p107 = scmp.ne.s32.totalorder %s98, %s99
      %p108 = scmp.eq.s32.totalorder %s25, 0
      %p109 = por %p107, %p108
      %p110 = scmp.ne.s32.totalorder %s98, %s99
      %p111 = scmp.eq.s32.totalorder %s26, 1
      %p112 = por %p110, %p111
      %p114 = scmp.ne.s32.totalorder %s99, %s113
      %p115 = scmp.eq.s32.totalorder %s26, 0
      %p116 = por %p114, %p115
      %s118 = sadd.s32 %s117, 1
      %p121 = scmp.eq.s32.totalorder %s20, 1
      %p122 = scmp.ne.s32.totalorder %s117, %s119
      %p123 = scmp.eq.s32.totalorder %s20, 0
      %p124 = por %p122, %p123
      %p125 = scmp.ne.s32.totalorder %s117, %s119
      %p126 = scmp.eq.s32.totalorder %s25, 1
      %p127 = por %p125, %p126
      %p128 = scmp.ne.s32.totalorder %s119, %s120
      %p129 = scmp.eq.s32.totalorder %s25, 0
      %p130 = por %p128, %p129
      %p131 = scmp.ne.s32.totalorder %s119, %s120
      %p132 = scmp.eq.s32.totalorder %s26, 1
      %p133 = por %p131, %p132
      %p135 = scmp.ne.s32.totalorder %s120, %s134
      %p136 = scmp.eq.s32.totalorder %s26, 0
      %p137 = por %p135, %p136
      %s139 = sadd.s32 %s138, 1
      %p142 = scmp.eq.s32.totalorder %s20, 1
      %p143 = scmp.ne.s32.totalorder %s138, %s140
      %p144 = scmp.eq.s32.totalorder %s20, 0
      %p145 = por %p143, %p144
      %p146 = scmp.ne.s32.totalorder %s138, %s140
      %p147 = scmp.eq.s32.totalorder %s25, 1
      %p148 = por %p146, %p147
      %p149 = scmp.ne.s32.totalorder %s140, %s141
      %p150 = scmp.eq.s32.totalorder %s25, 0
      %p151 = por %p149, %p150
      %p152 = scmp.ne.s32.totalorder %s140, %s141
      %p153 = scmp.eq.s32.totalorder %s26, 1
      %p154 = por %p152, %p153
      %p156 = scmp.ne.s32.totalorder %s141, %s155
      %p157 = scmp.eq.s32.totalorder %s26, 0
      %p158 = por %p156, %p157
      %s160 = sadd.s32 %s159, 1
      %p163 = scmp.eq.s32.totalorder %s20, 1
      %p164 = scmp.ne.s32.totalorder %s159, %s161
      %p165 = scmp.eq.s32.totalorder %s20, 0
      %p166 = por %p164, %p165
      %p167 = scmp.ne.s32.totalorder %s159, %s161
      %p168 = scmp.eq.s32.totalorder %s25, 1
      %p169 = por %p167, %p168
      %p170 = scmp.ne.s32.totalorder %s161, %s162
      %p171 = scmp.eq.s32.totalorder %s25, 0
      %p172 = por %p170, %p171
      %p173 = scmp.ne.s32.totalorder %s161, %s162
      %p174 = scmp.eq.s32.totalorder %s26, 1
      %p175 = por %p173, %p174
      %p177 = scmp.ne.s32.totalorder %s162, %s176
      %p178 = scmp.eq.s32.totalorder %s26, 0
      %p179 = por %p177, %p178
      %s181 = sadd.s32 %s180, 1
      %p184 = scmp.eq.s32.totalorder %s20, 1
      %p185 = scmp.ne.s32.totalorder %s180, %s182
      %p186 = scmp.eq.s32.totalorder %s20, 0
      %p187 = por %p185, %p186
      %p188 = scmp.ne.s32.totalorder %s180, %s182
      %p189 = scmp.eq.s32.totalorder %s25, 1
      %p190 = por %p188, %p189
      %p191 = scmp.ne.s32.totalorder %s182, %s183
      %p192 = scmp.eq.s32.totalorder %s25, 0
      %p193 = por %p191, %p192
      %p194 = scmp.ne.s32.totalorder %s182, %s183
      %p195 = scmp.eq.s32.totalorder %s26, 1
      %p196 = por %p194, %p195
      %p198 = scmp.ne.s32.totalorder %s183, %s197
      %p199 = scmp.eq.s32.totalorder %s26, 0
      %p200 = por %p198, %p199
      %s202 = sadd.s32 %s201, 1
      %p205 = scmp.eq.s32.totalorder %s20, 1
      %p206 = scmp.ne.s32.totalorder %s201, %s203
      %p207 = scmp.eq.s32.totalorder %s20, 0
      %p208 = por %p206, %p207
      %p209 = scmp.ne.s32.totalorder %s201, %s203
      %p210 = scmp.eq.s32.totalorder %s25, 1
      %p211 = por %p209, %p210
      %p212 = scmp.ne.s32.totalorder %s203, %s204
      %p213 = scmp.eq.s32.totalorder %s25, 0
      %p214 = por %p212, %p213
      %p215 = scmp.ne.s32.totalorder %s203, %s204
      %p216 = scmp.eq.s32.totalorder %s26, 1
      %p217 = por %p215, %p216
      %p219 = scmp.ne.s32.totalorder %s204, %s218
      %p220 = scmp.eq.s32.totalorder %s26, 0
      %p221 = por %p219, %p220
      %s223 = sadd.s32 %s222, 1
      %p226 = scmp.eq.s32.totalorder %s20, 1
      %p227 = scmp.ne.s32.totalorder %s222, %s224
      %p228 = scmp.eq.s32.totalorder %s20, 0
      %p229 = por %p227, %p228
      %p230 = scmp.ne.s32.totalorder %s222, %s224
      %p231 = scmp.eq.s32.totalorder %s25, 1
      %p232 = por %p230, %p231
      %p233 = scmp.ne.s32.totalorder %s224, %s225
      %p234 = scmp.eq.s32.totalorder %s25, 0
      %p235 = por %p233, %p234
      %p236 = scmp.ne.s32.totalorder %s224, %s225
      %p237 = scmp.eq.s32.totalorder %s26, 1
      %p238 = por %p236, %p237
      %p240 = scmp.ne.s32.totalorder %s225, %s239
      %p241 = scmp.eq.s32.totalorder %s26, 0
      %p242 = por %p240, %p241
      %s244 = sadd.s32 %s243, 1
      %p247 = scmp.eq.s32.totalorder %s20, 1
      %p248 = scmp.ne.s32.totalorder %s243, %s245
      %p249 = scmp.eq.s32.totalorder %s20, 0
      %p250 = por %p248, %p249
      %p251 = scmp.ne.s32.totalorder %s243, %s245
      %p252 = scmp.eq.s32.totalorder %s25, 1
      %p253 = por %p251, %p252
      %p254 = scmp.ne.s32.totalorder %s245, %s246
      %p255 = scmp.eq.s32.totalorder %s25, 0
      %p256 = por %p254, %p255
      %p257 = scmp.ne.s32.totalorder %s245, %s246
      %p258 = scmp.eq.s32.totalorder %s26, 1
      %p259 = por %p257, %p258
      %p261 = scmp.ne.s32.totalorder %s246, %s260
      %p262 = scmp.eq.s32.totalorder %s26, 0
      %p263 = por %p261, %p262
      %s264 = ssub.s32 %s20, %s27
      %p265 = scmp.eq.s32.totalorder %s264, 0
      %s267 = sadd.s32 %s266, 1
      %s268 = scalar_select %p265, %s266, %s267
      %p271 = pneg %p265
      %p272 = scmp.eq.s32.totalorder %s20, 1
      %p273 = por %p271, %p272
      %p274 = scmp.ne.s32.totalorder %s266, %s269
      %p275 = scmp.eq.s32.totalorder %s20, 0
      %p276 = por %p274, %p275
      %p277 = scmp.ne.s32.totalorder %s266, %s269
      %p278 = scmp.eq.s32.totalorder %s25, 1
      %p279 = por %p277, %p278
      %p280 = scmp.ne.s32.totalorder %s269, %s270
      %p281 = scmp.eq.s32.totalorder %s25, 0
      %p282 = por %p280, %p281
      %p283 = scmp.ne.s32.totalorder %s269, %s270
      %p284 = scmp.eq.s32.totalorder %s26, 1
      %p285 = por %p283, %p284
      %p287 = scmp.ne.s32.totalorder %s270, %s286
      %p288 = scmp.eq.s32.totalorder %s26, 0
      %p289 = por %p287, %p288
      %p290 = scmp.le.s32.totalorder 1, %s20
      %p291 = scmp.lt.s32.totalorder %s20, 3
      %p292 = pnand %p290, %p291
      %p293 = pneg %p292
      // Predicated region
      $region9: #{tpu_custom_call.1} parent=5 // pred_check
        _
      $region10: #{tpu_custom_call.1} parent=5 // pred_check_branch
        %295 = sbr.rel (%p292) target = $region12
      $region11: #{tpu_custom_call.1} parent=5 // pred_region
        %s296 = ssub.s32 %s20, 1
        // Predicated region
        $region13: #{tpu_custom_call.1} parent=11 // pred_check
          %p297 = pneg %p67
        $region14: #{tpu_custom_call.1} parent=11 // pred_check_branch
          %299 = sbr.rel (%p297) target = $region16
        $region15: #{tpu_custom_call.1} parent=11 // pred_region
          _
        $region16: #{tpu_custom_call.1} parent=11 // pred_fallthru
          _
        // Predicated region
        $region17: #{tpu_custom_call.1} parent=11 // pred_check
          %p300 = pneg %p88
        $region18: #{tpu_custom_call.1} parent=11 // pred_check_branch
          %302 = sbr.rel (%p300) target = $region20
        $region19: #{tpu_custom_call.1} parent=11 // pred_region
          _
        $region20: #{tpu_custom_call.1} parent=11 // pred_fallthru
          _
        // Predicated region
        $region21: #{tpu_custom_call.1} parent=11 // pred_check
          %p303 = pneg %p109
        $region22: #{tpu_custom_call.1} parent=11 // pred_check_branch
          %305 = sbr.rel (%p303) target = $region24
        $region23: #{tpu_custom_call.1} parent=11 // pred_region
          _
        $region24: #{tpu_custom_call.1} parent=11 // pred_fallthru
          _
        // Predicated region
        $region25: #{tpu_custom_call.1} parent=11 // pred_check
          %p306 = pneg %p130
        $region26: #{tpu_custom_call.1} parent=11 // pred_check_branch
          %308 = sbr.rel (%p306) target = $region28
        $region27: #{tpu_custom_call.1} parent=11 // pred_region
          _
        $region28: #{tpu_custom_call.1} parent=11 // pred_fallthru
          _
        // Predicated region
        $region29: #{tpu_custom_call.1} parent=11 // pred_check
          %p309 = pneg %p151
        $region30: #{tpu_custom_call.1} parent=11 // pred_check_branch
          %311 = sbr.rel (%p309) target = $region32
        $region31: #{tpu_custom_call.1} parent=11 // pred_region
          _
        $region32: #{tpu_custom_call.1} parent=11 // pred_fallthru
          _
        // Predicated region
        $region33: #{tpu_custom_call.1} parent=11 // pred_check
          %p312 = pneg %p172
        $region34: #{tpu_custom_call.1} parent=11 // pred_check_branch
          %314 = sbr.rel (%p312) target = $region36
        $region35: #{tpu_custom_call.1} parent=11 // pred_region
          _
        $region36: #{tpu_custom_call.1} parent=11 // pred_fallthru
          _
        // Predicated region
        $region37: #{tpu_custom_call.1} parent=11 // pred_check
          %p315 = pneg %p193
        $region38: #{tpu_custom_call.1} parent=11 // pred_check_branch
          %317 = sbr.rel (%p315) target = $region40
        $region39: #{tpu_custom_call.1} parent=11 // pred_region
          _
        $region40: #{tpu_custom_call.1} parent=11 // pred_fallthru
          _
        // Predicated region
        $region41: #{tpu_custom_call.1} parent=11 // pred_check
          %p318 = pneg %p214
        $region42: #{tpu_custom_call.1} parent=11 // pred_check_branch
          %320 = sbr.rel (%p318) target = $region44
        $region43: #{tpu_custom_call.1} parent=11 // pred_region
          _
        $region44: #{tpu_custom_call.1} parent=11 // pred_fallthru
          _
        // Predicated region
        $region45: #{tpu_custom_call.1} parent=11 // pred_check
          %p321 = pneg %p235
        $region46: #{tpu_custom_call.1} parent=11 // pred_check_branch
          %323 = sbr.rel (%p321) target = $region48
        $region47: #{tpu_custom_call.1} parent=11 // pred_region
          _
        $region48: #{tpu_custom_call.1} parent=11 // pred_fallthru
          _
        // Predicated region
        $region49: #{tpu_custom_call.1} parent=11 // pred_check
          %p324 = pneg %p256
        $region50: #{tpu_custom_call.1} parent=11 // pred_check_branch
          %326 = sbr.rel (%p324) target = $region52
        $region51: #{tpu_custom_call.1} parent=11 // pred_region
          _
        $region52: #{tpu_custom_call.1} parent=11 // pred_fallthru
          _
      $region12: #{tpu_custom_call.1} parent=5 // pred_fallthru
        _
      %p327 = scmp.lt.s32.totalorder %s20, 2
      // Predicated region
      $region53: #{tpu_custom_call.1} parent=5 // pred_check
        %p328 = pneg %p327
      $region54: #{tpu_custom_call.1} parent=5 // pred_check_branch
        %330 = sbr.rel (%p328) target = $region56
      $region55: #{tpu_custom_call.1} parent=5 // pred_region
        // Predicated region
        $region57: #{tpu_custom_call.1} parent=55 // pred_check
          %p331 = pneg %p40
        $region58: #{tpu_custom_call.1} parent=55 // pred_check_branch
          %333 = sbr.rel (%p331) target = $region60
        $region59: #{tpu_custom_call.1} parent=55 // pred_region
          %s334 = smul.u32 4, %s20
          %p335 = scmp.lt.s32.totalorder %s334, 7
          %s336 = scalar_select %p335, %s334, 7
          %s337 = smul.addr %s336, 8
          %s338 = scalar_lea.vmem %s0, %s337
          %s339 = smul.u32 4, %s20
        $region60: #{tpu_custom_call.1} parent=55 // pred_fallthru
          _
      $region56: #{tpu_custom_call.1} parent=5 // pred_fallthru
        _
      %p340 = scmp.le.s32.totalorder 1, %s20
      %p341 = scmp.lt.s32.totalorder %s20, 3
      %p342 = pnand %p340, %p341
      %p343 = pneg %p342
      // Predicated region
      $region61: #{tpu_custom_call.1} parent=5 // pred_check
        _
      $region62: #{tpu_custom_call.1} parent=5 // pred_check_branch
        %345 = sbr.rel (%p342) target = $region64
      $region63: #{tpu_custom_call.1} parent=5 // pred_region
        %s346 = ssub.s32 %s20, 1
        %s347 = smul.u32 4, %s25
        %p348 = scmp.lt.s32.totalorder %s347, 7
        %s349 = scalar_select %p348, %s347, 7
        %s350 = smul.addr %s349, 8
        %s351 = scalar_lea.vmem %s0, %s350
        %p352 = pneg %p46
        %p353 = pneg %p43
        %p354 = pneg %p67
        %p355 = pneg %p64
        %p356 = pneg %p88
        %p357 = pneg %p85
        %p358 = pneg %p109
        %p359 = pneg %p106
        %p360 = pneg %p130
        %p361 = pneg %p127
        %p362 = pneg %p151
        %p363 = pneg %p148
        %p364 = pneg %p172
        %p365 = pneg %p169
        %p366 = pneg %p193
        %p367 = pneg %p190
        %p368 = pneg %p214
        %p369 = pneg %p211
        %p370 = pneg %p235
        %p371 = pneg %p232
        %p372 = pneg %p256
        %p373 = pneg %p253
        %p374 = pneg %p282
        %p375 = pneg %p279
        %s376 = sand.u32 %s269, 1
        %s377 = scalar_lea.sflag [#allocation3], %s376
        %s378 = sand.u32 %s269, 1
        %s379 = smul.addr %s378, 32
        %s380 = scalar_lea.vmem [#allocation2], %s379
        %s381 = smul.u32 4, %s25
        %p382 = scmp.lt.s32.totalorder %s381, 7
        %s383 = scalar_select %p382, %s381, 7
        %s384 = smul.addr %s383, 8
        %s385 = scalar_lea.vmem %s0, %s384
        %s386 = smul.u32 4, %s25
        %s387 = smul.u32 4, %s25
        %v388 = vld [vmem:[%s385] sm:$0xff]
        %v389 = vld [vmem:[%s385 + $0x8] sm:$0xff]
        %v390 = vld [vmem:[%s385 + $0x10] sm:$0xff]
        %v391 = vld [vmem:[%s385 + $0x18] sm:$0xff]
        %v392 = vld [vmem:[%s1] sm:$0xff]
        %v393 = vld [vmem:[%s1 + $0x8] sm:$0xff]
        %v394 = vld [vmem:[%s2] sm:$0x1]
        %v396 = vlaneseq
        %v397 = vshrl.u32 %v396, 7
        %v398 = vsub.s32 0, %v397
        %v399 = vrot.slane %v394, %v398
        %vm401 = vcmask 130048
        %v403 = vsel %vm401, %v388, 0
        %v406 = vsel %vm401, %v389, 0
        %v409 = vsel %vm401, %v390, 0
        %v412 = vsel %vm401, %v391, 0
        %414 = vmatprep.subr.mxu0 0.0
        %415 = vmatpush1.msra.mxu0 0.0
        %416 = vmatprep.subr.mxu0 0.0
        %417 = vmatpush1.msra.mxu0 0.0
        %418 = vmatprep.subr.mxu0 0.0
        %419 = vmatpush1.msra.mxu0 0.0
        %420 = vmatprep.subr.mxu0 0.0
        %421 = vmatpush1.msra.mxu0 0.0
        %422 = vmatprep.subr.mxu0 0.0
        %423 = vmatpush1.msra.mxu0 0.0
        %424 = vmatprep.subr.mxu0 0.0
        %425 = vmatpush1.msra.mxu0 0.0
        %426 = vmatprep.subr.mxu0 0.0
        %427 = vmatpush1.msra.mxu0 0.0
        %428 = vmatprep.subr.mxu0 0.0
        %429 = vmatpush1.msra.mxu0 0.0
        %430 = vmatprep.subr.mxu0 0.0
        %431 = vmatpush1.msra.mxu0 0.0
        %432 = vmatprep.subr.mxu0 0.0
        %433 = vmatpush1.msra.mxu0 0.0
        %434 = vmatprep.subr.mxu0 0.0
        %435 = vmatpush1.msra.mxu0 0.0
        %436 = vmatprep.subr.mxu0 0.0
        %437 = vmatpush1.msra.mxu0 0.0
        %438 = vmatprep.subr.mxu0 0.0
        %439 = vmatpush1.msra.mxu0 0.0
        %440 = vmatprep.subr.mxu0 0.0
        %441 = vmatpush1.msra.mxu0 0.0
        %442 = vmatprep.subr.mxu0 0.0
        %443 = vmatpush1.msra.mxu0 %v393
        %444 = vmatprep.subr.mxu0 0.0
        %445 = vmatpush1.msra.mxu0 %v392
        %446 = vmatprep.subr.mxu0 0.0
        %447 = vmatpush2.msra.mxu0 0.0
        %448 = vmatprep.subr.mxu0 0.0
        %449 = vmatpush2.msra.mxu0 0.0
        %450 = vmatprep.subr.mxu0 0.0
        %451 = vmatpush2.msra.mxu0 0.0
        %452 = vmatprep.subr.mxu0 0.0
        %453 = vmatpush2.msra.mxu0 0.0
        %454 = vmatprep.subr.mxu0 0.0
        %455 = vmatpush2.msra.mxu0 0.0
        %456 = vmatprep.subr.mxu0 0.0
        %457 = vmatpush2.msra.mxu0 0.0
        %458 = vmatprep.subr.mxu0 0.0
        %459 = vmatpush2.msra.mxu0 0.0
        %460 = vmatprep.subr.mxu0 0.0
        %461 = vmatpush2.msra.mxu0 0.0
        %462 = vmatprep.subr.mxu0 0.0
        %463 = vmatpush2.msra.mxu0 0.0
        %464 = vmatprep.subr.mxu0 0.0
        %465 = vmatpush2.msra.mxu0 0.0
        %466 = vmatprep.subr.mxu0 0.0
        %467 = vmatpush2.msra.mxu0 0.0
        %468 = vmatprep.subr.mxu0 0.0
        %469 = vmatpush2.msra.mxu0 0.0
        %470 = vmatprep.subr.mxu0 0.0
        %471 = vmatpush2.msra.mxu0 0.0
        %472 = vmatprep.subr.mxu0 0.0
        %473 = vmatpush2.msra.mxu0 0.0
        %474 = vmatprep.subr.mxu0 0.0
        %475 = vmatpush2.msra.mxu0 0.0
        %476 = vmatprep.subr.mxu0 0.0
        %477 = vmatpush2.msra.mxu0 0.0
        %478 = vmatprep.mubr.f32.mxu0 0.0
        %479 = vmatmul.mubr.f32.gmra.mxu0 %v403
        %v480 = vpop.f32.mrf.mxu0
        %v481 = vadd.f32 %v399, %v480
        %v482 = vpop.f32.mrf.mxu0
        %483 = vmatprep.mubr.f32.mxu0 0.0
        %484 = vmatmul.mubr.f32.gmra.mxu0 %v406
        %v485 = vpop.f32.mrf.mxu0
        %v486 = vadd.f32 %v399, %v485
        %v487 = vpop.f32.mrf.mxu0
        %488 = vmatprep.mubr.f32.mxu0 0.0
        %489 = vmatmul.mubr.f32.gmra.mxu0 %v409
        %v490 = vpop.f32.mrf.mxu0
        %v491 = vadd.f32 %v399, %v490
        %v492 = vpop.f32.mrf.mxu0
        %493 = vmatprep.mubr.f32.mxu0 0.0
        %494 = vmatmul.mubr.f32.gmra.mxu0 %v412
        %v495 = vpop.f32.mrf.mxu0
        %v496 = vadd.f32 %v399, %v495
        %v497 = vpop.f32.mrf.mxu0
        %498 = vdwg.mxu0
        %v499 = vmax.f32 %v481, 0.0
        %v500 = vmax.f32 %v486, 0.0
        %v501 = vmax.f32 %v491, 0.0
        %v502 = vmax.f32 %v496, 0.0
        %v503 = vld [vmem:[%s3] sm:$0xff]
        %v504 = vld [vmem:[%s3 + $0x8] sm:$0xff]
        %v505 = vld [vmem:[%s3 + $0x10] sm:$0xff]
        %v506 = vld [vmem:[%s3 + $0x18] sm:$0xff]
        %v507 = vld [vmem:[%s4] sm:$0x1]
        %v509 = vlaneseq
        %v510 = vshrl.u32 %v509, 7
        %v511 = vsub.s32 0, %v510
        %v512 = vrot.slane %v507, %v511
        %vm514 = vcmask 261120
        %v516 = vsel %vm514, %v499, 0
        %v519 = vsel %vm514, %v500, 0
        %v522 = vsel %vm514, %v501, 0
        %v525 = vsel %vm514, %v502, 0
        %527 = vmatprep.subr.mxu0 0.0
        %528 = vmatpush1.msra.mxu0 0.0
        %529 = vmatprep.subr.mxu0 0.0
        %530 = vmatpush1.msra.mxu0 0.0
        %531 = vmatprep.subr.mxu0 0.0
        %532 = vmatpush1.msra.mxu0 0.0
        %533 = vmatprep.subr.mxu0 0.0
        %534 = vmatpush1.msra.mxu0 0.0
        %535 = vmatprep.subr.mxu0 0.0
        %536 = vmatpush1.msra.mxu0 0.0
        %537 = vmatprep.subr.mxu0 0.0
        %538 = vmatpush1.msra.mxu0 0.0
        %539 = vmatprep.subr.mxu0 0.0
        %540 = vmatpush1.msra.mxu0 0.0
        %541 = vmatprep.subr.mxu0 0.0
        %542 = vmatpush1.msra.mxu0 0.0
        %543 = vmatprep.subr.mxu0 0.0
        %544 = vmatpush1.msra.mxu0 0.0
        %545 = vmatprep.subr.mxu0 0.0
        %546 = vmatpush1.msra.mxu0 0.0
        %547 = vmatprep.subr.mxu0 0.0
        %548 = vmatpush1.msra.mxu0 0.0
        %549 = vmatprep.subr.mxu0 0.0
        %550 = vmatpush1.msra.mxu0 0.0
        %551 = vmatprep.subr.mxu0 0.0
        %552 = vmatpush1.msra.mxu0 %v506
        %553 = vmatprep.subr.mxu0 0.0
        %554 = vmatpush1.msra.mxu0 %v505
        %555 = vmatprep.subr.mxu0 0.0
        %556 = vmatpush1.msra.mxu0 %v504
        %557 = vmatprep.subr.mxu0 0.0
        %558 = vmatpush1.msra.mxu0 %v503
        %559 = vmatprep.subr.mxu0 0.0
        %560 = vmatpush2.msra.mxu0 0.0
        %561 = vmatprep.subr.mxu0 0.0
        %562 = vmatpush2.msra.mxu0 0.0
        %563 = vmatprep.subr.mxu0 0.0
        %564 = vmatpush2.msra.mxu0 0.0
        %565 = vmatprep.subr.mxu0 0.0
        %566 = vmatpush2.msra.mxu0 0.0
        %567 = vmatprep.subr.mxu0 0.0
        %568 = vmatpush2.msra.mxu0 0.0
        %569 = vmatprep.subr.mxu0 0.0
        %570 = vmatpush2.msra.mxu0 0.0
        %571 = vmatprep.subr.mxu0 0.0
        %572 = vmatpush2.msra.mxu0 0.0
        %573 = vmatprep.subr.mxu0 0.0
        %574 = vmatpush2.msra.mxu0 0.0
        %575 = vmatprep.subr.mxu0 0.0
        %576 = vmatpush2.msra.mxu0 0.0
        %577 = vmatprep.subr.mxu0 0.0
        %578 = vmatpush2.msra.mxu0 0.0
        %579 = vmatprep.subr.mxu0 0.0
        %580 = vmatpush2.msra.mxu0 0.0
        %581 = vmatprep.subr.mxu0 0.0
        %582 = vmatpush2.msra.mxu0 0.0
        %583 = vmatprep.subr.mxu0 0.0
        %584 = vmatpush2.msra.mxu0 0.0
        %585 = vmatprep.subr.mxu0 0.0
        %586 = vmatpush2.msra.mxu0 0.0
        %587 = vmatprep.subr.mxu0 0.0
        %588 = vmatpush2.msra.mxu0 0.0
        %589 = vmatprep.subr.mxu0 0.0
        %590 = vmatpush2.msra.mxu0 0.0
        %591 = vmatprep.mubr.f32.mxu0 0.0
        %592 = vmatmul.mubr.f32.gmra.mxu0 %v516
        %v593 = vpop.f32.mrf.mxu0
        %v594 = vadd.f32 %v512, %v593
        %v595 = vpop.f32.mrf.mxu0
        %596 = vmatprep.mubr.f32.mxu0 0.0
        %597 = vmatmul.mubr.f32.gmra.mxu0 %v519
        %v598 = vpop.f32.mrf.mxu0
        %v599 = vadd.f32 %v512, %v598
        %v600 = vpop.f32.mrf.mxu0
        %601 = vmatprep.mubr.f32.mxu0 0.0
        %602 = vmatmul.mubr.f32.gmra.mxu0 %v522
        %v603 = vpop.f32.mrf.mxu0
        %v604 = vadd.f32 %v512, %v603
        %v605 = vpop.f32.mrf.mxu0
        %606 = vmatprep.mubr.f32.mxu0 0.0
        %607 = vmatmul.mubr.f32.gmra.mxu0 %v525
        %v608 = vpop.f32.mrf.mxu0
        %v609 = vadd.f32 %v512, %v608
        %v610 = vpop.f32.mrf.mxu0
        %611 = vdwg.mxu0
        %v612 = vmax.f32 %v594, 0.0
        %v613 = vmax.f32 %v599, 0.0
        %v614 = vmax.f32 %v604, 0.0
        %v615 = vmax.f32 %v609, 0.0
        %v616 = vld [vmem:[%s5] sm:$0xff]
        %v617 = vld [vmem:[%s5 + $0x8] sm:$0xff]
        %v618 = vld [vmem:[%s5 + $0x10] sm:$0xff]
        %v619 = vld [vmem:[%s5 + $0x18] sm:$0xff]
        %v620 = vld [vmem:[%s6] sm:$0x1]
        %v622 = vlaneseq
        %v623 = vshrl.u32 %v622, 7
        %v624 = vsub.s32 0, %v623
        %v625 = vrot.slane %v620, %v624
        %v628 = vsel %vm514, %v612, 0
        %v631 = vsel %vm514, %v613, 0
        %v634 = vsel %vm514, %v614, 0
        %v637 = vsel %vm514, %v615, 0
        %639 = vmatprep.subr.mxu0 0.0
        %640 = vmatpush1.msra.mxu0 0.0
        %641 = vmatprep.subr.mxu0 0.0
        %642 = vmatpush1.msra.mxu0 0.0
        %643 = vmatprep.subr.mxu0 0.0
        %644 = vmatpush1.msra.mxu0 0.0
        %645 = vmatprep.subr.mxu0 0.0
        %646 = vmatpush1.msra.mxu0 0.0
        %647 = vmatprep.subr.mxu0 0.0
        %648 = vmatpush1.msra.mxu0 0.0
        %649 = vmatprep.subr.mxu0 0.0
        %650 = vmatpush1.msra.mxu0 0.0
        %651 = vmatprep.subr.mxu0 0.0
        %652 = vmatpush1.msra.mxu0 0.0
        %653 = vmatprep.subr.mxu0 0.0
        %654 = vmatpush1.msra.mxu0 0.0
        %655 = vmatprep.subr.mxu0 0.0
        %656 = vmatpush1.msra.mxu0 0.0
        %657 = vmatprep.subr.mxu0 0.0
        %658 = vmatpush1.msra.mxu0 0.0
        %659 = vmatprep.subr.mxu0 0.0
        %660 = vmatpush1.msra.mxu0 0.0
        %661 = vmatprep.subr.mxu0 0.0
        %662 = vmatpush1.msra.mxu0 0.0
        %663 = vmatprep.subr.mxu0 0.0
        %664 = vmatpush1.msra.mxu0 %v619
        %665 = vmatprep.subr.mxu0 0.0
        %666 = vmatpush1.msra.mxu0 %v618
        %667 = vmatprep.subr.mxu0 0.0
        %668 = vmatpush1.msra.mxu0 %v617
        %669 = vmatprep.subr.mxu0 0.0
        %670 = vmatpush1.msra.mxu0 %v616
        %671 = vmatprep.subr.mxu0 0.0
        %672 = vmatpush2.msra.mxu0 0.0
        %673 = vmatprep.subr.mxu0 0.0
        %674 = vmatpush2.msra.mxu0 0.0
        %675 = vmatprep.subr.mxu0 0.0
        %676 = vmatpush2.msra.mxu0 0.0
        %677 = vmatprep.subr.mxu0 0.0
        %678 = vmatpush2.msra.mxu0 0.0
        %679 = vmatprep.subr.mxu0 0.0
        %680 = vmatpush2.msra.mxu0 0.0
        %681 = vmatprep.subr.mxu0 0.0
        %682 = vmatpush2.msra.mxu0 0.0
        %683 = vmatprep.subr.mxu0 0.0
        %684 = vmatpush2.msra.mxu0 0.0
        %685 = vmatprep.subr.mxu0 0.0
        %686 = vmatpush2.msra.mxu0 0.0
        %687 = vmatprep.subr.mxu0 0.0
        %688 = vmatpush2.msra.mxu0 0.0
        %689 = vmatprep.subr.mxu0 0.0
        %690 = vmatpush2.msra.mxu0 0.0
        %691 = vmatprep.subr.mxu0 0.0
        %692 = vmatpush2.msra.mxu0 0.0
        %693 = vmatprep.subr.mxu0 0.0
        %694 = vmatpush2.msra.mxu0 0.0
        %695 = vmatprep.subr.mxu0 0.0
        %696 = vmatpush2.msra.mxu0 0.0
        %697 = vmatprep.subr.mxu0 0.0
        %698 = vmatpush2.msra.mxu0 0.0
        %699 = vmatprep.subr.mxu0 0.0
        %700 = vmatpush2.msra.mxu0 0.0
        %701 = vmatprep.subr.mxu0 0.0
        %702 = vmatpush2.msra.mxu0 0.0
        %703 = vmatprep.mubr.f32.mxu0 0.0
        %704 = vmatmul.mubr.f32.gmra.mxu0 %v628
        %v705 = vpop.f32.mrf.mxu0
        %v706 = vadd.f32 %v625, %v705
        %v707 = vpop.f32.mrf.mxu0
        %708 = vmatprep.mubr.f32.mxu0 0.0
        %709 = vmatmul.mubr.f32.gmra.mxu0 %v631
        %v710 = vpop.f32.mrf.mxu0
        %v711 = vadd.f32 %v625, %v710
        %v712 = vpop.f32.mrf.mxu0
        %713 = vmatprep.mubr.f32.mxu0 0.0
        %714 = vmatmul.mubr.f32.gmra.mxu0 %v634
        %v715 = vpop.f32.mrf.mxu0
        %v716 = vadd.f32 %v625, %v715
        %v717 = vpop.f32.mrf.mxu0
        %718 = vmatprep.mubr.f32.mxu0 0.0
        %719 = vmatmul.mubr.f32.gmra.mxu0 %v637
        %v720 = vpop.f32.mrf.mxu0
        %v721 = vadd.f32 %v625, %v720
        %v722 = vpop.f32.mrf.mxu0
        %723 = vdwg.mxu0
        %v724 = vmax.f32 %v706, 0.0
        %v725 = vmax.f32 %v711, 0.0
        %v726 = vmax.f32 %v716, 0.0
        %v727 = vmax.f32 %v721, 0.0
        %v728 = vld [vmem:[%s7] sm:$0xff]
        %v729 = vld [vmem:[%s7 + $0x8] sm:$0xff]
        %v730 = vld [vmem:[%s8] sm:$0x1]
        %v732 = vlaneseq
        %v733 = vshrl.u32 %v732, 7
        %v734 = vsub.s32 0, %v733
        %v735 = vrot.slane %v730, %v734
        %v738 = vsel %vm401, %v724, 0
        %v741 = vsel %vm401, %v725, 0
        %v744 = vsel %vm401, %v726, 0
        %v747 = vsel %vm401, %v727, 0
        %749 = vmatprep.subr.mxu0 0.0
        %750 = vmatpush1.msra.mxu0 0.0
        %751 = vmatprep.subr.mxu0 0.0
        %752 = vmatpush1.msra.mxu0 0.0
        %753 = vmatprep.subr.mxu0 0.0
        %754 = vmatpush1.msra.mxu0 0.0
        %755 = vmatprep.subr.mxu0 0.0
        %756 = vmatpush1.msra.mxu0 0.0
        %757 = vmatprep.subr.mxu0 0.0
        %758 = vmatpush1.msra.mxu0 0.0
        %759 = vmatprep.subr.mxu0 0.0
        %760 = vmatpush1.msra.mxu0 0.0
        %761 = vmatprep.subr.mxu0 0.0
        %762 = vmatpush1.msra.mxu0 0.0
        %763 = vmatprep.subr.mxu0 0.0
        %764 = vmatpush1.msra.mxu0 0.0
        %765 = vmatprep.subr.mxu0 0.0
        %766 = vmatpush1.msra.mxu0 0.0
        %767 = vmatprep.subr.mxu0 0.0
        %768 = vmatpush1.msra.mxu0 0.0
        %769 = vmatprep.subr.mxu0 0.0
        %770 = vmatpush1.msra.mxu0 0.0
        %771 = vmatprep.subr.mxu0 0.0
        %772 = vmatpush1.msra.mxu0 0.0
        %773 = vmatprep.subr.mxu0 0.0
        %774 = vmatpush1.msra.mxu0 0.0
        %775 = vmatprep.subr.mxu0 0.0
        %776 = vmatpush1.msra.mxu0 0.0
        %777 = vmatprep.subr.mxu0 0.0
        %778 = vmatpush1.msra.mxu0 %v729
        %779 = vmatprep.subr.mxu0 0.0
        %780 = vmatpush1.msra.mxu0 %v728
        %781 = vmatprep.subr.mxu0 0.0
        %782 = vmatpush2.msra.mxu0 0.0
        %783 = vmatprep.subr.mxu0 0.0
        %784 = vmatpush2.msra.mxu0 0.0
        %785 = vmatprep.subr.mxu0 0.0
        %786 = vmatpush2.msra.mxu0 0.0
        %787 = vmatprep.subr.mxu0 0.0
        %788 = vmatpush2.msra.mxu0 0.0
        %789 = vmatprep.subr.mxu0 0.0
        %790 = vmatpush2.msra.mxu0 0.0
        %791 = vmatprep.subr.mxu0 0.0
        %792 = vmatpush2.msra.mxu0 0.0
        %793 = vmatprep.subr.mxu0 0.0
        %794 = vmatpush2.msra.mxu0 0.0
        %795 = vmatprep.subr.mxu0 0.0
        %796 = vmatpush2.msra.mxu0 0.0
        %797 = vmatprep.subr.mxu0 0.0
        %798 = vmatpush2.msra.mxu0 0.0
        %799 = vmatprep.subr.mxu0 0.0
        %800 = vmatpush2.msra.mxu0 0.0
        %801 = vmatprep.subr.mxu0 0.0
        %802 = vmatpush2.msra.mxu0 0.0
        %803 = vmatprep.subr.mxu0 0.0
        %804 = vmatpush2.msra.mxu0 0.0
        %805 = vmatprep.subr.mxu0 0.0
        %806 = vmatpush2.msra.mxu0 0.0
        %807 = vmatprep.subr.mxu0 0.0
        %808 = vmatpush2.msra.mxu0 0.0
        %809 = vmatprep.subr.mxu0 0.0
        %810 = vmatpush2.msra.mxu0 0.0
        %811 = vmatprep.subr.mxu0 0.0
        %812 = vmatpush2.msra.mxu0 0.0
        %813 = vmatprep.mubr.f32.mxu0 0.0
        %814 = vmatmul.mubr.f32.gmra.mxu0 %v738
        %v815 = vpop.f32.mrf.mxu0
        %v816 = vadd.f32 %v735, %v815
        %v817 = vpop.f32.mrf.mxu0
        %818 = vmatprep.mubr.f32.mxu0 0.0
        %819 = vmatmul.mubr.f32.gmra.mxu0 %v741
        %v820 = vpop.f32.mrf.mxu0
        %v821 = vadd.f32 %v735, %v820
        %v822 = vpop.f32.mrf.mxu0
        %823 = vmatprep.mubr.f32.mxu0 0.0
        %824 = vmatmul.mubr.f32.gmra.mxu0 %v744
        %v825 = vpop.f32.mrf.mxu0
        %v826 = vadd.f32 %v735, %v825
        %v827 = vpop.f32.mrf.mxu0
        %828 = vmatprep.mubr.f32.mxu0 0.0
        %829 = vmatmul.mubr.f32.gmra.mxu0 %v747
        %v830 = vpop.f32.mrf.mxu0
        %v831 = vadd.f32 %v735, %v830
        %v832 = vpop.f32.mrf.mxu0
        %833 = vdwg.mxu0
        %v834 = vmax.f32 %v816, 0.0
        %v835 = vmax.f32 %v821, 0.0
        %v836 = vmax.f32 %v826, 0.0
        %v837 = vmax.f32 %v831, 0.0
        %v838 = vld [vmem:[%s9] sm:$0xff]
        %v839 = vld [vmem:[%s9 + $0x8] sm:$0xff]
        %v840 = vld [vmem:[%s10] sm:$0x1]
        %v842 = vlaneseq
        %v843 = vshrl.u32 %v842, 7
        %v844 = vsub.s32 0, %v843
        %v845 = vrot.slane %v840, %v844
        %v848 = vsel %vm401, %v834, 0
        %v851 = vsel %vm401, %v835, 0
        %v854 = vsel %vm401, %v836, 0
        %v857 = vsel %vm401, %v837, 0
        %859 = vmatprep.subr.mxu0 0.0
        %860 = vmatpush1.msra.mxu0 0.0
        %861 = vmatprep.subr.mxu0 0.0
        %862 = vmatpush1.msra.mxu0 0.0
        %863 = vmatprep.subr.mxu0 0.0
        %864 = vmatpush1.msra.mxu0 0.0
        %865 = vmatprep.subr.mxu0 0.0
        %866 = vmatpush1.msra.mxu0 0.0
        %867 = vmatprep.subr.mxu0 0.0
        %868 = vmatpush1.msra.mxu0 0.0
        %869 = vmatprep.subr.mxu0 0.0
        %870 = vmatpush1.msra.mxu0 0.0
        %871 = vmatprep.subr.mxu0 0.0
        %872 = vmatpush1.msra.mxu0 0.0
        %873 = vmatprep.subr.mxu0 0.0
        %874 = vmatpush1.msra.mxu0 0.0
        %875 = vmatprep.subr.mxu0 0.0
        %876 = vmatpush1.msra.mxu0 0.0
        %877 = vmatprep.subr.mxu0 0.0
        %878 = vmatpush1.msra.mxu0 0.0
        %879 = vmatprep.subr.mxu0 0.0
        %880 = vmatpush1.msra.mxu0 0.0
        %881 = vmatprep.subr.mxu0 0.0
        %882 = vmatpush1.msra.mxu0 0.0
        %883 = vmatprep.subr.mxu0 0.0
        %884 = vmatpush1.msra.mxu0 0.0
        %885 = vmatprep.subr.mxu0 0.0
        %886 = vmatpush1.msra.mxu0 0.0
        %887 = vmatprep.subr.mxu0 0.0
        %888 = vmatpush1.msra.mxu0 %v839
        %889 = vmatprep.subr.mxu0 0.0
        %890 = vmatpush1.msra.mxu0 %v838
        %891 = vmatprep.subr.mxu0 0.0
        %892 = vmatpush2.msra.mxu0 0.0
        %893 = vmatprep.subr.mxu0 0.0
        %894 = vmatpush2.msra.mxu0 0.0
        %895 = vmatprep.subr.mxu0 0.0
        %896 = vmatpush2.msra.mxu0 0.0
        %897 = vmatprep.subr.mxu0 0.0
        %898 = vmatpush2.msra.mxu0 0.0
        %899 = vmatprep.subr.mxu0 0.0
        %900 = vmatpush2.msra.mxu0 0.0
        %901 = vmatprep.subr.mxu0 0.0
        %902 = vmatpush2.msra.mxu0 0.0
        %903 = vmatprep.subr.mxu0 0.0
        %904 = vmatpush2.msra.mxu0 0.0
        %905 = vmatprep.subr.mxu0 0.0
        %906 = vmatpush2.msra.mxu0 0.0
        %907 = vmatprep.subr.mxu0 0.0
        %908 = vmatpush2.msra.mxu0 0.0
        %909 = vmatprep.subr.mxu0 0.0
        %910 = vmatpush2.msra.mxu0 0.0
        %911 = vmatprep.subr.mxu0 0.0
        %912 = vmatpush2.msra.mxu0 0.0
        %913 = vmatprep.subr.mxu0 0.0
        %914 = vmatpush2.msra.mxu0 0.0
        %915 = vmatprep.subr.mxu0 0.0
        %916 = vmatpush2.msra.mxu0 0.0
        %917 = vmatprep.subr.mxu0 0.0
        %918 = vmatpush2.msra.mxu0 0.0
        %919 = vmatprep.subr.mxu0 0.0
        %920 = vmatpush2.msra.mxu0 0.0
        %921 = vmatprep.subr.mxu0 0.0
        %922 = vmatpush2.msra.mxu0 0.0
        %923 = vmatprep.mubr.f32.mxu0 0.0
        %924 = vmatmul.mubr.f32.gmra.mxu0 %v848
        %v925 = vpop.f32.mrf.mxu0
        %v926 = vadd.f32 %v845, %v925
        %v927 = vpop.f32.mrf.mxu0
        %928 = vmatprep.mubr.f32.mxu0 0.0
        %929 = vmatmul.mubr.f32.gmra.mxu0 %v851
        %v930 = vpop.f32.mrf.mxu0
        %v931 = vadd.f32 %v845, %v930
        %v932 = vpop.f32.mrf.mxu0
        %933 = vmatprep.mubr.f32.mxu0 0.0
        %934 = vmatmul.mubr.f32.gmra.mxu0 %v854
        %v935 = vpop.f32.mrf.mxu0
        %v936 = vadd.f32 %v845, %v935
        %v937 = vpop.f32.mrf.mxu0
        %938 = vmatprep.mubr.f32.mxu0 0.0
        %939 = vmatmul.mubr.f32.gmra.mxu0 %v857
        %v940 = vpop.f32.mrf.mxu0
        %v941 = vadd.f32 %v845, %v940
        %v942 = vpop.f32.mrf.mxu0
        %943 = vdwg.mxu0
        %v944 = vlaneseq
        %v945 = vand.u32 %v944, 127
        %vm946 = vcmp.lt.s32.totalorder %v945, 4
        %v947 = vtanh.pop %v926
        %v948 = vtanh.pop %v931
        %v949 = vtanh.pop %v936
        %v950 = vtanh.pop %v941
        %v951 = vsel %vm946, %v947, %v926
        %v952 = vsel %vm946, %v948, %v931
        %v953 = vsel %vm946, %v949, %v936
        %v954 = vsel %vm946, %v950, %v941
        %955 = vst [vmem:[%s380] sm:$0xff] %v951
        %956 = vst [vmem:[%s380 + $0x8] sm:$0xff] %v952
        %957 = vst [vmem:[%s380 + $0x10] sm:$0xff] %v953
        %958 = vst [vmem:[%s380 + $0x18] sm:$0xff] %v954
        %s959 = sand.u32 %s269, 1
        %s960 = scalar_lea.sflag [#allocation3], %s959
        %s961 = sand.u32 %s269, 1
        %s962 = smul.addr %s961, 32
        %s963 = scalar_lea.vmem [#allocation2], %s962
        // Predicated region
        $region65: #{tpu_custom_call.1} parent=63 // pred_check
          %p964 = pneg %p279
        $region66: #{tpu_custom_call.1} parent=63 // pred_check_branch
          %966 = sbr.rel (%p964) target = $region68
        $region67: #{tpu_custom_call.1} parent=63 // pred_region
          %s967 = smul.u32 4, %s25
          %s969 = ssub.s32 512, 512
          %970 = vsyncadd %s960, %s969
          %s971 = smul.addr %s967, 128
          %s972 = scalar_lea.hbm %s11, %s971
          %s973 = sshll.u32 %s963, 4
          %s974 = int_to_ptr.vmem [resolvable:$true] %s973
          %979 = dma.vmem_to_hbm [thread:$0]  %s974, 512, %s972, %s960, 128, 128, 8
        $region68: #{tpu_custom_call.1} parent=63 // pred_fallthru
          _
      $region64: #{tpu_custom_call.1} parent=5 // pred_fallthru
        _
      %p980 = scmp.le.s32.totalorder 2, %s20
      // Predicated region
      $region69: #{tpu_custom_call.1} parent=5 // pred_check
        %p981 = pneg %p980
      $region70: #{tpu_custom_call.1} parent=5 // pred_check_branch
        %983 = sbr.rel (%p981) target = $region72
      $region71: #{tpu_custom_call.1} parent=5 // pred_region
        %s984 = ssub.s32 %s20, 2
        // Predicated region
        $region73: #{tpu_custom_call.1} parent=71 // pred_check
          %p985 = pneg %p285
        $region74: #{tpu_custom_call.1} parent=71 // pred_check_branch
          %987 = sbr.rel (%p985) target = $region76
        $region75: #{tpu_custom_call.1} parent=71 // pred_region
          %s988 = sand.u32 %s270, 1
          %s989 = scalar_lea.sflag [#allocation3], %s988
          %s990 = sand.u32 %s270, 1
          %s991 = smul.addr %s990, 32
          %s992 = scalar_lea.vmem [#allocation2], %s991
          %993 = dma.done %s989, 512
        $region76: #{tpu_custom_call.1} parent=71 // pred_fallthru
          _
      $region72: #{tpu_custom_call.1} parent=5 // pred_fallthru
        _
    $region6: #{tpu_custom_call.1} parent=1 // loop_footer
      %s24 = sadd.s32 1, %s20
    $region7: #{tpu_custom_call.1} parent=1 // loop_footer_branch
      %19 = sbr.rel target = $region3
    $region8: #{tpu_custom_call.1} parent=1 // loop_exit
      _
    %994 = vsyncpa [#allocation3], 1
    %s995 = scalar_lea.sflag [#allocation3], 1
    %996 = vsyncpa %s995, 1

</llo_original>
